<compile_context>
chip_gen: v5e
topology: v5e:2x2
jax: 0.10.0
libtpu: 0.0.40
codegen_flags: <defaults>
</compile_context>

<pallas_src>
import functools

import jax
import jax.numpy as jnp
from jax.experimental import pallas as pl
from jax.experimental.pallas import tpu as pltpu

# Module hyper-parameters (from WeightedDiceBCE.__init__)
DICE_WEIGHT = 1.0
BCE_WEIGHT = 0.5
DICE_W = (0.5, 0.5)   # WeightedDiceLoss(weights=[0.5, 0.5])  (equal -> constant per-pixel weight)
BCE_W = (0.5, 0.5)    # WeightedBCE(weights=[0.5, 0.5])
SMOOTH = 1e-5
_LANE = 128


def _fold_add(o_ref, k, v):
    """Accumulate a dense (r, 128) f32 tile into accumulator row k of the (1,1,7,8,128) block."""
    r = v.shape[0]
    if r % 8 == 0:
        chunk = v if r == 8 else v.reshape(r // 8, 8, _LANE).sum(axis=0)
        o_ref[0, 0, k, :, :] += chunk          # pure vreg adds, no cross-lane movement
    else:
        # Only reachable when the whole HW fits in a single tile (rows < 8 or not a multiple of
        # 8), so a full scalar reduce once per sample is negligible.
        s = jnp.sum(v)
        row = jax.lax.broadcasted_iota(jnp.int32, (8, _LANE), 0)
        o_ref[0, 0, k, :, :] += jnp.where(row == 0, s, 0.0)


def _wdb_kernel(x_ref, t_ref, o_ref, *, rows, tiles_per_split, need_mask, hard_labels):
    # x_ref: (1, C, R, 128) probabilities (native dtype); t_ref: (1, 1, R, 128) targets.
    # o_ref: (1, 1, 7, 8, 128) f32 per-(sample, split) accumulators, revisited across the tile axis.
    j = pl.program_id(2)

    @pl.when(j == 0)
    def _init():
        o_ref[...] = jnp.zeros_like(o_ref)

    c = x_ref.shape[1]
    r = x_ref.shape[2]

    # Channel max as dense (R, 128) full-vreg VALU maxima in the native dtype; upcast once after.
    p = x_ref[0, 0]
    for ch in range(1, c):
        p = jnp.maximum(p, x_ref[0, ch])
    p = p.astype(jnp.float32)                    # (R, 128)
    t = t_ref[0, 0].astype(jnp.float32)          # (R, 128)

    if need_mask:
        # Ragged last tile / clamped duplicate tiles: zero out rows past the valid row count.
        gtile = pl.program_id(1) * tiles_per_split + j
        ridx = jax.lax.broadcasted_iota(jnp.int32, (r, _LANE), 0) + gtile * r
        valid = ridx < rows
        p = jnp.where(valid, p, 0.0)
        t = jnp.where(valid, t, 0.0)

    # ---- Dice partial sums (constant per-pixel weight w=0.5 folded into the wrapper epilogue) ----
    pt = p * t
    pp = p * p
    tt = t * t

    # ---- BCE partial sums (F.binary_cross_entropy clamps each log term at -100) ----
    pos = (t > 0.5).astype(jnp.float32)
    neg = (t < 0.5).astype(jnp.float32)
    if need_mask:
        neg = jnp.where(valid, neg, 0.0)         # masked pixels would otherwise count as negatives

    if hard_labels:
        # Single-log fast path (only valid for binary targets).
        q = jnp.where(t > 0.5, p, 1.0 - p)
        bce = -jnp.maximum(jnp.log(q), -100.0)
    else:
        log_p = jnp.maximum(jnp.log(p), -100.0)        # clamp BEFORE multiply: avoids 0 * -inf
        log_1mp = jnp.maximum(jnp.log(1.0 - p), -100.0)
        bce = -(t * log_p + (1.0 - t) * log_1mp)
    # Masked / zero-padded pixels (p = 0, t = 0) give bce == 0 on both paths -> no extra mask.

    bpos = pos * bce
    bneg = neg * bce

    for k, v in enumerate((pt, pp, tt, bpos, bneg, pos, neg)):
        _fold_add(o_ref, k, v)


def weighted_dice_bce(inputs, targets, *, tile_rows=2048, hw_splits=2, assume_hard_labels=False):
    """inputs: (N, C, H, W) probabilities; targets: (N, H, W). Returns scalar loss."""
    n, c, h, w = inputs.shape
    hw = h * w

    t = targets
    if t.dtype == jnp.bool_:
        t = t.astype(jnp.int8)                   # keep targets narrow in HBM

    x = inputs.reshape(n, c, hw)
    t = t.reshape(n, 1, hw)

    # Pad HW only to the 128-lane boundary (needed to split HW into (rows, 128); usually a no-op).
    hw128 = pl.cdiv(hw, _LANE) * _LANE
    if hw128 != hw:
        # Zero padding: p=0, t=0 contributes 0 to every sum except the negative-pixel count,
        # corrected exactly below.
        x = jnp.pad(x, ((0, 0), (0, 0), (0, hw128 - hw)))
        t = jnp.pad(t, ((0, 0), (0, 0), (0, hw128 - hw)))
    rows = hw128 // _LANE
    x = x.reshape(n, c, rows, _LANE)
    t = t.reshape(n, 1, rows, _LANE)

    # Tile rows: big enough that each grid step moves multi-MiB slabs (amortizes ~0.35us per-step
    # pipeline overhead), small enough that double-buffered inputs stay <= ~10 MiB of VMEM on
    # every generation (v7x has only 64 MiB physical VMEM).
    per_row_bytes = _LANE * (c * x.dtype.itemsize + t.dtype.itemsize)
    cap_rows = max(8, ((10 << 20) // (2 * per_row_bytes)) // 8 * 8)
    tr = max(8, (min(tile_rows, cap_rows) // 8) * 8)
    if rows <= tr:
        tr = rows                                # single tile: full-extent block is always legal
    tiles_total = pl.cdiv(rows, tr)

    # Parallel split of the HW axis keeps both v7x TensorCores busy when N is small or odd
    # (harmless on single-TC v5e/v6e).
    splits = hw_splits if tiles_total >= hw_splits else 1
    tiles_per_split = pl.cdiv(tiles_total, splits)
    need_mask = (splits * tiles_per_split * tr) != rows

    kernel = functools.partial(_wdb_kernel, rows=rows, tiles_per_split=tiles_per_split,
                               need_mask=need_mask, hard_labels=assume_hard_labels)

    def in_map(i, p, j):
        # Clamp so duplicated trailing iterations re-read the last valid tile (masked in-kernel).
        tile = jnp.minimum(p * tiles_per_split + j, tiles_total - 1)
        return (i, 0, tile, 0)

    grid = (n, splits, tiles_per_split)

    partials = pl.pallas_call(
        kernel,
        out_shape=jax.ShapeDtypeStruct((n, splits, 7, 8, _LANE), jnp.float32),
        grid=grid,
        in_specs=[
            pl.BlockSpec((1, c, tr, _LANE), in_map),
            pl.BlockSpec((1, 1, tr, _LANE), in_map),
        ],
        out_specs=pl.BlockSpec((1, 1, 7, 8, _LANE), lambda i, p, j: (i, p, 0, 0, 0)),
        compiler_params=pltpu.CompilerParams(
            dimension_semantics=("parallel", "parallel", "arbitrary"),
            vmem_limit_bytes=32 * 1024 * 1024,
        ),
        cost_estimate=pl.CostEstimate(
            flops=int(n * rows * _LANE * (c + 24)),
            transcendentals=int((1 if assume_hard_labels else 2) * n * rows * _LANE),
            bytes_accessed=int(x.size * x.dtype.itemsize + t.size * t.dtype.itemsize
                               + n * splits * 7 * 8 * _LANE * 4),
        ),
    )(x, t)

    # ---- tiny scalar epilogue (7 reductions + a handful of scalar ops) ----
    parts = partials.sum(axis=(1, 3, 4))                    # (N, 7)
    s_pt, s_pp, s_tt = parts[:, 0], parts[:, 1], parts[:, 2]
    s_bpos, s_bneg, s_pos, s_neg = parts[:, 3], parts[:, 4], parts[:, 5], parts[:, 6]

    # Dice: per-pixel weight w = t*(w1-w0)+w0 is the constant 0.5 (equal weights) -> w^2 factor.
    wsq = DICE_W[0] * DICE_W[0]
    inter = wsq * s_pt
    union = wsq * (s_pp + s_tt)
    dice = 1.0 - (2.0 * inter + SMOOTH) / (union + SMOOTH)  # (N,)
    dice_loss = jnp.mean(dice)

    # BCE: global pos/neg counts; remove lane-padded pixels counted as negatives (their bce == 0).
    pad_neg = float(n * (hw128 - hw))
    pos_weight = jnp.sum(s_pos) + 1e-12
    neg_weight = jnp.sum(s_neg) - pad_neg + 1e-12
    bce_loss = (BCE_W[0] * jnp.sum(s_bpos) / pos_weight
                + BCE_W[1] * jnp.sum(s_bneg) / neg_weight)

    return DICE_WEIGHT * dice_loss + BCE_WEIGHT * bce_loss


def _reference(inputs, targets):
    """Pure-JAX reference mirroring the PyTorch module, for a sanity check."""
    n = inputs.shape[0]
    p = jnp.max(inputs, axis=1).reshape(n, -1)
    t = targets.reshape(n, -1).astype(jnp.float32)
    # dice
    wgt = t * (DICE_W[1] - DICE_W[0]) + DICE_W[0]
    wp, wt = wgt * p, wgt * t
    inter = jnp.sum(wp * wt, -1)
    union = jnp.sum(wp * wp, -1) + jnp.sum(wt * wt, -1)
    dice = jnp.mean(1.0 - (2.0 * inter + SMOOTH) / (union + SMOOTH))
    # bce
    pf, tf = p.reshape(-1), t.reshape(-1)
    le = -(tf * jnp.maximum(jnp.log(pf), -100.0)
           + (1.0 - tf) * jnp.maximum(jnp.log(1.0 - pf), -100.0))
    pos = (tf > 0.5).astype(jnp.float32)
    neg = (tf < 0.5).astype(jnp.float32)
    bce = jnp.sum(BCE_W[0] * pos * le / (pos.sum() + 1e-12)
                  + BCE_W[1] * neg * le / (neg.sum() + 1e-12))
    return DICE_WEIGHT * dice + BCE_WEIGHT * bce


if __name__ == "__main__":
    key = jax.random.PRNGKey(0)
    k1, k2, k3, k4 = jax.random.split(key, 4)

    # Case 1: small aligned shape (single dense tile per sample).
    N, C, H, W = 2, 4, 16, 16
    inputs = jax.nn.sigmoid(jax.random.normal(k1, (N, C, H, W), jnp.float32))
    targets = (jax.random.uniform(k2, (N, H, W)) > 0.5).astype(jnp.float32)
    loss = jax.block_until_ready(weighted_dice_bce(inputs, targets))
    ref = jax.block_until_ready(_reference(inputs, targets))
    assert jnp.allclose(loss, ref, rtol=1e-4, atol=1e-6), (loss, ref)

    # Case 2: ragged shape exercising lane padding, multi-tile accumulation, the parallel HW
    # split and the in-kernel tail masking (small tile_rows forces several tiles).
    N2, C2, H2, W2 = 2, 4, 41, 64
    inputs2 = jax.nn.sigmoid(jax.random.normal(k3, (N2, C2, H2, W2), jnp.float32))
    targets2 = (jax.random.uniform(k4, (N2, H2, W2)) > 0.5).astype(jnp.float32)
    loss2 = jax.block_until_ready(
        weighted_dice_bce(inputs2, targets2, tile_rows=8, hw_splits=2))
    ref2 = jax.block_until_ready(_reference(inputs2, targets2))
    assert jnp.allclose(loss2, ref2, rtol=1e-4, atol=1e-6), (loss2, ref2)

    print("KERNEL_OK")
</pallas_src>

<mosaic_0001>
module attributes {stable_mosaic.version = 11 : i64} {
  func.func @_wdb_kernel(%arg0: i32, %arg1: i32, %arg2: i32, %arg3: memref<1x4x2x128xf32, #tpu.memory_space<vmem>>, %arg4: memref<1x1x2x128xf32, #tpu.memory_space<vmem>>, %arg5: memref<1x1x7x8x128xf32, #tpu.memory_space<vmem>>) attributes {dimension_semantics = [#tpu.dimension_semantics<parallel>, #tpu.dimension_semantics<parallel>, #tpu.dimension_semantics<arbitrary>], iteration_bounds = array<i64: 2, 1, 1>, scalar_prefetch = 0 : i64, scratch_operands = 0 : i64, tpu.core_type = #tpu.core_type<tc>, window_params = [{transform_indices = @transform_0, window_bounds = array<i64: 1, 4, 2, 128>}, {transform_indices = @transform_1, window_bounds = array<i64: 1, 1, 2, 128>}, {transform_indices = @transform_2, window_bounds = array<i64: 1, 1, 7, 8, 128>}]} {
    %c0_i32 = arith.constant 0 : i32
    %0 = arith.cmpi eq, %arg2, %c0_i32 : i32
    %1 = arith.extui %0 : i1 to i32
    %c0_i32_0 = arith.constant 0 : i32
    %2 = arith.cmpi ne, %1, %c0_i32_0 : i32
    scf.if %2 {
      %cst_111 = arith.constant 0.000000e+00 : f32
      %156 = vector.broadcast %cst_111 : f32 to vector<1x1x7x8x128xf32>
      %c0_112 = arith.constant 0 : index
      %c0_113 = arith.constant 0 : index
      %c0_114 = arith.constant 0 : index
      %c0_115 = arith.constant 0 : index
      %c0_116 = arith.constant 0 : index
      %157 = vector.load %arg5[%c0_112, %c0_113, %c0_114, %c0_115, %c0_116] : memref<1x1x7x8x128xf32, #tpu.memory_space<vmem>>, vector<1x1x7x8x128xf32>
      tpu.vector_store %arg5[%c0_112, %c0_113, %c0_114, %c0_115, %c0_116], %156 {strides = array<i32>} : memref<1x1x7x8x128xf32, #tpu.memory_space<vmem>>, vector<1x1x7x8x128xf32>,
    } else {
    }
    %c0 = arith.constant 0 : index
    %c0_1 = arith.constant 0 : index
    %c0_2 = arith.constant 0 : index
    %c0_3 = arith.constant 0 : index
    %3 = vector.load %arg3[%c0, %c0_1, %c0_2, %c0_3] : memref<1x4x2x128xf32, #tpu.memory_space<vmem>>, vector<1x1x2x128xf32>
    %4 = vector.shape_cast %3 : vector<1x1x2x128xf32> to vector<2x128xf32>
    %c0_4 = arith.constant 0 : index
    %c1 = arith.constant 1 : index
    %c0_5 = arith.constant 0 : index
    %c0_6 = arith.constant 0 : index
    %5 = vector.load %arg3[%c0_4, %c1, %c0_5, %c0_6] : memref<1x4x2x128xf32, #tpu.memory_space<vmem>>, vector<1x1x2x128xf32>
    %6 = vector.shape_cast %5 : vector<1x1x2x128xf32> to vector<2x128xf32>
    %7 = arith.maximumf %4, %6 : vector<2x128xf32>
    %c0_7 = arith.constant 0 : index
    %c2 = arith.constant 2 : index
    %c0_8 = arith.constant 0 : index
    %c0_9 = arith.constant 0 : index
    %8 = vector.load %arg3[%c0_7, %c2, %c0_8, %c0_9] : memref<1x4x2x128xf32, #tpu.memory_space<vmem>>, vector<1x1x2x128xf32>
    %9 = vector.shape_cast %8 : vector<1x1x2x128xf32> to vector<2x128xf32>
    %10 = arith.maximumf %7, %9 : vector<2x128xf32>
    %c0_10 = arith.constant 0 : index
    %c3 = arith.constant 3 : index
    %c0_11 = arith.constant 0 : index
    %c0_12 = arith.constant 0 : index
    %11 = vector.load %arg3[%c0_10, %c3, %c0_11, %c0_12] : memref<1x4x2x128xf32, #tpu.memory_space<vmem>>, vector<1x1x2x128xf32>
    %12 = vector.shape_cast %11 : vector<1x1x2x128xf32> to vector<2x128xf32>
    %13 = arith.maximumf %10, %12 : vector<2x128xf32>
    %c0_13 = arith.constant 0 : index
    %c0_14 = arith.constant 0 : index
    %c0_15 = arith.constant 0 : index
    %c0_16 = arith.constant 0 : index
    %14 = vector.load %arg4[%c0_13, %c0_14, %c0_15, %c0_16] : memref<1x1x2x128xf32, #tpu.memory_space<vmem>>, vector<1x1x2x128xf32>
    %15 = vector.shape_cast %14 : vector<1x1x2x128xf32> to vector<2x128xf32>
    %16 = arith.mulf %13, %15 : vector<2x128xf32>
    %17 = arith.mulf %13, %13 : vector<2x128xf32>
    %18 = arith.mulf %15, %15 : vector<2x128xf32>
    %cst = arith.constant 5.000000e-01 : f32
    %19 = vector.broadcast %cst : f32 to vector<2x128xf32>
    %20 = arith.cmpf ogt, %15, %19 : vector<2x128xf32>
    %21 = arith.extui %20 : vector<2x128xi1> to vector<2x128xi32>
    %22 = arith.sitofp %21 : vector<2x128xi32> to vector<2x128xf32>
    %cst_17 = arith.constant 5.000000e-01 : f32
    %23 = vector.broadcast %cst_17 : f32 to vector<2x128xf32>
    %24 = arith.cmpf olt, %15, %23 : vector<2x128xf32>
    %25 = arith.extui %24 : vector<2x128xi1> to vector<2x128xi32>
    %26 = arith.sitofp %25 : vector<2x128xi32> to vector<2x128xf32>
    %27 = math.log %13 : vector<2x128xf32>
    %cst_18 = arith.constant -1.000000e+02 : f32
    %28 = vector.broadcast %cst_18 : f32 to vector<2x128xf32>
    %29 = arith.maximumf %27, %28 : vector<2x128xf32>
    %cst_19 = arith.constant 1.000000e+00 : f32
    %30 = vector.broadcast %cst_19 : f32 to vector<2x128xf32>
    %31 = arith.subf %30, %13 : vector<2x128xf32>
    %32 = math.log %31 : vector<2x128xf32>
    %cst_20 = arith.constant -1.000000e+02 : f32
    %33 = vector.broadcast %cst_20 : f32 to vector<2x128xf32>
    %34 = arith.maximumf %32, %33 : vector<2x128xf32>
    %35 = arith.mulf %15, %29 : vector<2x128xf32>
    %cst_21 = arith.constant 1.000000e+00 : f32
    %36 = vector.broadcast %cst_21 : f32 to vector<2x128xf32>
    %37 = arith.subf %36, %15 : vector<2x128xf32>
    %38 = arith.mulf %37, %34 : vector<2x128xf32>
    %39 = arith.addf %35, %38 : vector<2x128xf32>
    %cst_22 = arith.constant 0.000000e+00 : f32
    %40 = vector.broadcast %cst_22 : f32 to vector<2x128xf32>
    %41 = arith.subf %40, %39 : vector<2x128xf32>
    %42 = arith.mulf %22, %41 : vector<2x128xf32>
    %43 = arith.mulf %26, %41 : vector<2x128xf32>
    %44 = vector.shape_cast %16 : vector<2x128xf32> to vector<1x2x128xf32>
    %cst_23 = arith.constant dense<0.000000e+00> : vector<1xf32>
    %45 = vector.multi_reduction <add>, %44, %cst_23 [1, 2] : vector<1x2x128xf32> to vector<1xf32>
    %46 = vector.shape_cast %45 : vector<1xf32> to vector<1x1x1xf32>
    %47 = vector.extract %46[0, 0, 0] : f32 from vector<1x1x1xf32>
    %48 = tpu.iota {dimensions = array<i32: 0>} : vector<8x128xi32>
    %c0_24 = arith.constant 0 : index
    %c0_25 = arith.constant 0 : index
    %c0_26 = arith.constant 0 : index
    %c0_27 = arith.constant 0 : index
    %c0_28 = arith.constant 0 : index
    %49 = vector.load %arg5[%c0_24, %c0_25, %c0_26, %c0_27, %c0_28] : memref<1x1x7x8x128xf32, #tpu.memory_space<vmem>>, vector<1x1x1x8x128xf32>
    %50 = vector.shape_cast %49 : vector<1x1x1x8x128xf32> to vector<8x128xf32>
    %c0_i32_29 = arith.constant 0 : i32
    %51 = vector.broadcast %c0_i32_29 : i32 to vector<8x128xi32>
    %52 = arith.cmpi eq, %48, %51 : vector<8x128xi32>
    %cst_30 = arith.constant 0.000000e+00 : f32
    %53 = vector.broadcast %47 : f32 to vector<8x128xf32>
    %54 = vector.broadcast %cst_30 : f32 to vector<8x128xf32>
    %55 = arith.select %52, %53, %54 : vector<8x128xi1>, vector<8x128xf32>
    %56 = arith.addf %50, %55 : vector<8x128xf32>
    %c0_31 = arith.constant 0 : index
    %c0_32 = arith.constant 0 : index
    %c0_33 = arith.constant 0 : index
    %c0_34 = arith.constant 0 : index
    %c0_35 = arith.constant 0 : index
    %57 = vector.load %arg5[%c0_31, %c0_32, %c0_33, %c0_34, %c0_35] : memref<1x1x7x8x128xf32, #tpu.memory_space<vmem>>, vector<1x1x1x8x128xf32>
    %58 = vector.shape_cast %57 : vector<1x1x1x8x128xf32> to vector<8x128xf32>
    %59 = vector.shape_cast %56 : vector<8x128xf32> to vector<1x1x1x8x128xf32>
    tpu.vector_store %arg5[%c0_31, %c0_32, %c0_33, %c0_34, %c0_35], %59 {strides = array<i32>} : memref<1x1x7x8x128xf32, #tpu.memory_space<vmem>>, vector<1x1x1x8x128xf32>,
    %60 = vector.shape_cast %17 : vector<2x128xf32> to vector<1x2x128xf32>
    %cst_36 = arith.constant dense<0.000000e+00> : vector<1xf32>
    %61 = vector.multi_reduction <add>, %60, %cst_36 [1, 2] : vector<1x2x128xf32> to vector<1xf32>
    %62 = vector.shape_cast %61 : vector<1xf32> to vector<1x1x1xf32>
    %63 = vector.extract %62[0, 0, 0] : f32 from vector<1x1x1xf32>
    %64 = tpu.iota {dimensions = array<i32: 0>} : vector<8x128xi32>
    %c0_37 = arith.constant 0 : index
    %c0_38 = arith.constant 0 : index
    %c1_39 = arith.constant 1 : index
    %c0_40 = arith.constant 0 : index
    %c0_41 = arith.constant 0 : index
    %65 = vector.load %arg5[%c0_37, %c0_38, %c1_39, %c0_40, %c0_41] : memref<1x1x7x8x128xf32, #tpu.memory_space<vmem>>, vector<1x1x1x8x128xf32>
    %66 = vector.shape_cast %65 : vector<1x1x1x8x128xf32> to vector<8x128xf32>
    %c0_i32_42 = arith.constant 0 : i32
    %67 = vector.broadcast %c0_i32_42 : i32 to vector<8x128xi32>
    %68 = arith.cmpi eq, %64, %67 : vector<8x128xi32>
    %cst_43 = arith.constant 0.000000e+00 : f32
    %69 = vector.broadcast %63 : f32 to vector<8x128xf32>
    %70 = vector.broadcast %cst_43 : f32 to vector<8x128xf32>
    %71 = arith.select %68, %69, %70 : vector<8x128xi1>, vector<8x128xf32>
    %72 = arith.addf %66, %71 : vector<8x128xf32>
    %c0_44 = arith.constant 0 : index
    %c0_45 = arith.constant 0 : index
    %c1_46 = arith.constant 1 : index
    %c0_47 = arith.constant 0 : index
    %c0_48 = arith.constant 0 : index
    %73 = vector.load %arg5[%c0_44, %c0_45, %c1_46, %c0_47, %c0_48] : memref<1x1x7x8x128xf32, #tpu.memory_space<vmem>>, vector<1x1x1x8x128xf32>
    %74 = vector.shape_cast %73 : vector<1x1x1x8x128xf32> to vector<8x128xf32>
    %75 = vector.shape_cast %72 : vector<8x128xf32> to vector<1x1x1x8x128xf32>
    tpu.vector_store %arg5[%c0_44, %c0_45, %c1_46, %c0_47, %c0_48], %75 {strides = array<i32>} : memref<1x1x7x8x128xf32, #tpu.memory_space<vmem>>, vector<1x1x1x8x128xf32>,
    %76 = vector.shape_cast %18 : vector<2x128xf32> to vector<1x2x128xf32>
    %cst_49 = arith.constant dense<0.000000e+00> : vector<1xf32>
    %77 = vector.multi_reduction <add>, %76, %cst_49 [1, 2] : vector<1x2x128xf32> to vector<1xf32>
    %78 = vector.shape_cast %77 : vector<1xf32> to vector<1x1x1xf32>
    %79 = vector.extract %78[0, 0, 0] : f32 from vector<1x1x1xf32>
    %80 = tpu.iota {dimensions = array<i32: 0>} : vector<8x128xi32>
    %c0_50 = arith.constant 0 : index
    %c0_51 = arith.constant 0 : index
    %c2_52 = arith.constant 2 : index
    %c0_53 = arith.constant 0 : index
    %c0_54 = arith.constant 0 : index
    %81 = vector.load %arg5[%c0_50, %c0_51, %c2_52, %c0_53, %c0_54] : memref<1x1x7x8x128xf32, #tpu.memory_space<vmem>>, vector<1x1x1x8x128xf32>
    %82 = vector.shape_cast %81 : vector<1x1x1x8x128xf32> to vector<8x128xf32>
    %c0_i32_55 = arith.constant 0 : i32
    %83 = vector.broadcast %c0_i32_55 : i32 to vector<8x128xi32>
    %84 = arith.cmpi eq, %80, %83 : vector<8x128xi32>
    %cst_56 = arith.constant 0.000000e+00 : f32
    %85 = vector.broadcast %79 : f32 to vector<8x128xf32>
    %86 = vector.broadcast %cst_56 : f32 to vector<8x128xf32>
    %87 = arith.select %84, %85, %86 : vector<8x128xi1>, vector<8x128xf32>
    %88 = arith.addf %82, %87 : vector<8x128xf32>
    %c0_57 = arith.constant 0 : index
    %c0_58 = arith.constant 0 : index
    %c2_59 = arith.constant 2 : index
    %c0_60 = arith.constant 0 : index
    %c0_61 = arith.constant 0 : index
    %89 = vector.load %arg5[%c0_57, %c0_58, %c2_59, %c0_60, %c0_61] : memref<1x1x7x8x128xf32, #tpu.memory_space<vmem>>, vector<1x1x1x8x128xf32>
    %90 = vector.shape_cast %89 : vector<1x1x1x8x128xf32> to vector<8x128xf32>
    %91 = vector.shape_cast %88 : vector<8x128xf32> to vector<1x1x1x8x128xf32>
    tpu.vector_store %arg5[%c0_57, %c0_58, %c2_59, %c0_60, %c0_61], %91 {strides = array<i32>} : memref<1x1x7x8x128xf32, #tpu.memory_space<vmem>>, vector<1x1x1x8x128xf32>,
    %92 = vector.shape_cast %42 : vector<2x128xf32> to vector<1x2x128xf32>
    %cst_62 = arith.constant dense<0.000000e+00> : vector<1xf32>
    %93 = vector.multi_reduction <add>, %92, %cst_62 [1, 2] : vector<1x2x128xf32> to vector<1xf32>
    %94 = vector.shape_cast %93 : vector<1xf32> to vector<1x1x1xf32>
    %95 = vector.extract %94[0, 0, 0] : f32 from vector<1x1x1xf32>
    %96 = tpu.iota {dimensions = array<i32: 0>} : vector<8x128xi32>
    %c0_63 = arith.constant 0 : index
    %c0_64 = arith.constant 0 : index
    %c3_65 = arith.constant 3 : index
    %c0_66 = arith.constant 0 : index
    %c0_67 = arith.constant 0 : index
    %97 = vector.load %arg5[%c0_63, %c0_64, %c3_65, %c0_66, %c0_67] : memref<1x1x7x8x128xf32, #tpu.memory_space<vmem>>, vector<1x1x1x8x128xf32>
    %98 = vector.shape_cast %97 : vector<1x1x1x8x128xf32> to vector<8x128xf32>
    %c0_i32_68 = arith.constant 0 : i32
    %99 = vector.broadcast %c0_i32_68 : i32 to vector<8x128xi32>
    %100 = arith.cmpi eq, %96, %99 : vector<8x128xi32>
    %cst_69 = arith.constant 0.000000e+00 : f32
    %101 = vector.broadcast %95 : f32 to vector<8x128xf32>
    %102 = vector.broadcast %cst_69 : f32 to vector<8x128xf32>
    %103 = arith.select %100, %101, %102 : vector<8x128xi1>, vector<8x128xf32>
    %104 = arith.addf %98, %103 : vector<8x128xf32>
    %c0_70 = arith.constant 0 : index
    %c0_71 = arith.constant 0 : index
    %c3_72 = arith.constant 3 : index
    %c0_73 = arith.constant 0 : index
    %c0_74 = arith.constant 0 : index
    %105 = vector.load %arg5[%c0_70, %c0_71, %c3_72, %c0_73, %c0_74] : memref<1x1x7x8x128xf32, #tpu.memory_space<vmem>>, vector<1x1x1x8x128xf32>
    %106 = vector.shape_cast %105 : vector<1x1x1x8x128xf32> to vector<8x128xf32>
    %107 = vector.shape_cast %104 : vector<8x128xf32> to vector<1x1x1x8x128xf32>
    tpu.vector_store %arg5[%c0_70, %c0_71, %c3_72, %c0_73, %c0_74], %107 {strides = array<i32>} : memref<1x1x7x8x128xf32, #tpu.memory_space<vmem>>, vector<1x1x1x8x128xf32>,
    %108 = vector.shape_cast %43 : vector<2x128xf32> to vector<1x2x128xf32>
    %cst_75 = arith.constant dense<0.000000e+00> : vector<1xf32>
    %109 = vector.multi_reduction <add>, %108, %cst_75 [1, 2] : vector<1x2x128xf32> to vector<1xf32>
    %110 = vector.shape_cast %109 : vector<1xf32> to vector<1x1x1xf32>
    %111 = vector.extract %110[0, 0, 0] : f32 from vector<1x1x1xf32>
    %112 = tpu.iota {dimensions = array<i32: 0>} : vector<8x128xi32>
    %c0_76 = arith.constant 0 : index
    %c0_77 = arith.constant 0 : index
    %c4 = arith.constant 4 : index
    %c0_78 = arith.constant 0 : index
    %c0_79 = arith.constant 0 : index
    %113 = vector.load %arg5[%c0_76, %c0_77, %c4, %c0_78, %c0_79] : memref<1x1x7x8x128xf32, #tpu.memory_space<vmem>>, vector<1x1x1x8x128xf32>
    %114 = vector.shape_cast %113 : vector<1x1x1x8x128xf32> to vector<8x128xf32>
    %c0_i32_80 = arith.constant 0 : i32
    %115 = vector.broadcast %c0_i32_80 : i32 to vector<8x128xi32>
    %116 = arith.cmpi eq, %112, %115 : vector<8x128xi32>
    %cst_81 = arith.constant 0.000000e+00 : f32
    %117 = vector.broadcast %111 : f32 to vector<8x128xf32>
    %118 = vector.broadcast %cst_81 : f32 to vector<8x128xf32>
    %119 = arith.select %116, %117, %118 : vector<8x128xi1>, vector<8x128xf32>
    %120 = arith.addf %114, %119 : vector<8x128xf32>
    %c0_82 = arith.constant 0 : index
    %c0_83 = arith.constant 0 : index
    %c4_84 = arith.constant 4 : index
    %c0_85 = arith.constant 0 : index
    %c0_86 = arith.constant 0 : index
    %121 = vector.load %arg5[%c0_82, %c0_83, %c4_84, %c0_85, %c0_86] : memref<1x1x7x8x128xf32, #tpu.memory_space<vmem>>, vector<1x1x1x8x128xf32>
    %122 = vector.shape_cast %121 : vector<1x1x1x8x128xf32> to vector<8x128xf32>
    %123 = vector.shape_cast %120 : vector<8x128xf32> to vector<1x1x1x8x128xf32>
    tpu.vector_store %arg5[%c0_82, %c0_83, %c4_84, %c0_85, %c0_86], %123 {strides = array<i32>} : memref<1x1x7x8x128xf32, #tpu.memory_space<vmem>>, vector<1x1x1x8x128xf32>,
    %124 = vector.shape_cast %22 : vector<2x128xf32> to vector<1x2x128xf32>
    %cst_87 = arith.constant dense<0.000000e+00> : vector<1xf32>
    %125 = vector.multi_reduction <add>, %124, %cst_87 [1, 2] : vector<1x2x128xf32> to vector<1xf32>
    %126 = vector.shape_cast %125 : vector<1xf32> to vector<1x1x1xf32>
    %127 = vector.extract %126[0, 0, 0] : f32 from vector<1x1x1xf32>
    %128 = tpu.iota {dimensions = array<i32: 0>} : vector<8x128xi32>
    %c0_88 = arith.constant 0 : index
    %c0_89 = arith.constant 0 : index
    %c5 = arith.constant 5 : index
    %c0_90 = arith.constant 0 : index
    %c0_91 = arith.constant 0 : index
    %129 = vector.load %arg5[%c0_88, %c0_89, %c5, %c0_90, %c0_91] : memref<1x1x7x8x128xf32, #tpu.memory_space<vmem>>, vector<1x1x1x8x128xf32>
    %130 = vector.shape_cast %129 : vector<1x1x1x8x128xf32> to vector<8x128xf32>
    %c0_i32_92 = arith.constant 0 : i32
    %131 = vector.broadcast %c0_i32_92 : i32 to vector<8x128xi32>
    %132 = arith.cmpi eq, %128, %131 : vector<8x128xi32>
    %cst_93 = arith.constant 0.000000e+00 : f32
    %133 = vector.broadcast %127 : f32 to vector<8x128xf32>
    %134 = vector.broadcast %cst_93 : f32 to vector<8x128xf32>
    %135 = arith.select %132, %133, %134 : vector<8x128xi1>, vector<8x128xf32>
    %136 = arith.addf %130, %135 : vector<8x128xf32>
    %c0_94 = arith.constant 0 : index
    %c0_95 = arith.constant 0 : index
    %c5_96 = arith.constant 5 : index
    %c0_97 = arith.constant 0 : index
    %c0_98 = arith.constant 0 : index
    %137 = vector.load %arg5[%c0_94, %c0_95, %c5_96, %c0_97, %c0_98] : memref<1x1x7x8x128xf32, #tpu.memory_space<vmem>>, vector<1x1x1x8x128xf32>
    %138 = vector.shape_cast %137 : vector<1x1x1x8x128xf32> to vector<8x128xf32>
    %139 = vector.shape_cast %136 : vector<8x128xf32> to vector<1x1x1x8x128xf32>
    tpu.vector_store %arg5[%c0_94, %c0_95, %c5_96, %c0_97, %c0_98], %139 {strides = array<i32>} : memref<1x1x7x8x128xf32, #tpu.memory_space<vmem>>, vector<1x1x1x8x128xf32>,
    %140 = vector.shape_cast %26 : vector<2x128xf32> to vector<1x2x128xf32>
    %cst_99 = arith.constant dense<0.000000e+00> : vector<1xf32>
    %141 = vector.multi_reduction <add>, %140, %cst_99 [1, 2] : vector<1x2x128xf32> to vector<1xf32>
    %142 = vector.shape_cast %141 : vector<1xf32> to vector<1x1x1xf32>
    %143 = vector.extract %142[0, 0, 0] : f32 from vector<1x1x1xf32>
    %144 = tpu.iota {dimensions = array<i32: 0>} : vector<8x128xi32>
    %c0_100 = arith.constant 0 : index
    %c0_101 = arith.constant 0 : index
    %c6 = arith.constant 6 : index
    %c0_102 = arith.constant 0 : index
    %c0_103 = arith.constant 0 : index
    %145 = vector.load %arg5[%c0_100, %c0_101, %c6, %c0_102, %c0_103] : memref<1x1x7x8x128xf32, #tpu.memory_space<vmem>>, vector<1x1x1x8x128xf32>
    %146 = vector.shape_cast %145 : vector<1x1x1x8x128xf32> to vector<8x128xf32>
    %c0_i32_104 = arith.constant 0 : i32
    %147 = vector.broadcast %c0_i32_104 : i32 to vector<8x128xi32>
    %148 = arith.cmpi eq, %144, %147 : vector<8x128xi32>
    %cst_105 = arith.constant 0.000000e+00 : f32
    %149 = vector.broadcast %143 : f32 to vector<8x128xf32>
    %150 = vector.broadcast %cst_105 : f32 to vector<8x128xf32>
    %151 = arith.select %148, %149, %150 : vector<8x128xi1>, vector<8x128xf32>
    %152 = arith.addf %146, %151 : vector<8x128xf32>
    %c0_106 = arith.constant 0 : index
    %c0_107 = arith.constant 0 : index
    %c6_108 = arith.constant 6 : index
    %c0_109 = arith.constant 0 : index
    %c0_110 = arith.constant 0 : index
    %153 = vector.load %arg5[%c0_106, %c0_107, %c6_108, %c0_109, %c0_110] : memref<1x1x7x8x128xf32, #tpu.memory_space<vmem>>, vector<1x1x1x8x128xf32>
    %154 = vector.shape_cast %153 : vector<1x1x1x8x128xf32> to vector<8x128xf32>
    %155 = vector.shape_cast %152 : vector<8x128xf32> to vector<1x1x1x8x128xf32>
    tpu.vector_store %arg5[%c0_106, %c0_107, %c6_108, %c0_109, %c0_110], %155 {strides = array<i32>} : memref<1x1x7x8x128xf32, #tpu.memory_space<vmem>>, vector<1x1x1x8x128xf32>,
    return
  }
  func.func @transform_0(%arg0: i32, %arg1: i32, %arg2: i32) -> (i32, i32, i32, i32) {
    %c1_i32 = arith.constant 1 : i32
    %0 = arith.muli %arg1, %c1_i32 : i32
    %1 = arith.addi %0, %arg2 : i32
    %c0_i32 = arith.constant 0 : i32
    %2 = arith.minsi %1, %c0_i32 : i32
    %c0_i32_0 = arith.constant 0 : i32
    %c0_i32_1 = arith.constant 0 : i32
    %c0_i32_2 = arith.constant 0 : i32
    return %arg0, %c0_i32_0, %2, %c0_i32_1 : i32, i32, i32, i32
  }
  func.func @transform_1(%arg0: i32, %arg1: i32, %arg2: i32) -> (i32, i32, i32, i32) {
    %c1_i32 = arith.constant 1 : i32
    %0 = arith.muli %arg1, %c1_i32 : i32
    %1 = arith.addi %0, %arg2 : i32
    %c0_i32 = arith.constant 0 : i32
    %2 = arith.minsi %1, %c0_i32 : i32
    %c0_i32_0 = arith.constant 0 : i32
    %c0_i32_1 = arith.constant 0 : i32
    %c0_i32_2 = arith.constant 0 : i32
    return %arg0, %c0_i32_0, %2, %c0_i32_1 : i32, i32, i32, i32
  }
  func.func @transform_2(%arg0: i32, %arg1: i32, %arg2: i32) -> (i32, i32, i32, i32, i32) {
    %c0_i32 = arith.constant 0 : i32
    %c0_i32_0 = arith.constant 0 : i32
    %c0_i32_1 = arith.constant 0 : i32
    %c0_i32_2 = arith.constant 0 : i32
    return %arg0, %arg1, %c0_i32, %c0_i32_0, %c0_i32_1 : i32, i32, i32, i32, i32
  }
}

</mosaic_0001>

<llo_original>
// kernel: tpu_custom_call.1
$region0: #{tpu_custom_call.1}
  #allocation0 [shape = 'u32[]', space=smem, size = 0x4, offset = 0x4, fixed_abs, tag = 'smem constant byte address 0x4 - core index']
  #allocation1 [shape = 'u32[72,128]{1,0:T(1,128)}', space=vmem, size = 0x9000, scoped, tag = 'internal scratch']
  %s0 = inlined_call_operand.hbm [shape: f32[2,4,2,128], index: 0, kind: input, shape index: {}]
  %s1 = inlined_call_operand.hbm [shape: f32[2,1,2,128], index: 1, kind: input, shape index: {}]
  %s2 = inlined_call_operand.hbm [shape: f32[2,1,7,8,128], index: 2, kind: output, shape index: {}]
  %s3 = sld [smem:[#allocation0]]
  $region53: #{tpu_custom_call.1} parent=0
    _
  %s5 = ssub.s32 1, %s3
  %s6 = scalar_select 0, %s5, %s3
  $region1: #{tpu_custom_call.1} parent=0
    #allocation2 [shape = 'u8[8192]{0}', space=vmem, size = 0x2000, scoped, tag = 'input window, operand 0']
    #allocation3 [shape = 's32[2]{0}', space=sflag, size = 0x8, scoped, tag = 'scoped memory for tpu_custom_call.1']
    #allocation4 [shape = 's32[2]{0}', space=sflag, size = 0x8, scoped, tag = 'scoped memory for tpu_custom_call.1']
    #allocation5 [shape = 'u8[2048]{0}', space=vmem, size = 0x800, scoped, tag = 'input window, operand 1']
    #allocation6 [shape = 's32[2]{0}', space=sflag, size = 0x8, scoped, tag = 'scoped memory for tpu_custom_call.1']
    #allocation7 [shape = 'u8[57344]{0}', space=vmem, size = 0xe000, scoped, tag = 'output window, operand 0']
    %7 = vsyncpa [#allocation3], 0
    %s8 = scalar_lea.sflag [#allocation3], 1
    %9 = vsyncpa %s8, 0
    %10 = vsyncpa [#allocation6], 0
    %s11 = scalar_lea.sflag [#allocation6], 1
    %12 = vsyncpa %s11, 0
    %13 = vsyncpa [#allocation4], 0
    %s14 = scalar_lea.sflag [#allocation4], 1
    %15 = vsyncpa %s14, 0
    loop: start=0, step=1, limit=4
    $region2: #{tpu_custom_call.1} parent=1 // loop_pre_header
      _
    $region3: #{tpu_custom_call.1} parent=1 // loop_header
      %s17 = sphi 0, %s21
      %p18 = scmp.ge.s32.totalorder %s17, 4
      %s24 = sphi 0, %s43
      %s25 = sphi 0, %s39
      %s26 = sphi 0, %s35
      %s27 = sphi 0, %s24
      %s28 = sphi 0, %s25
      %s29 = sphi 0, %s26
      %s30 = sphi 0, %s27
      %s31 = sphi 0, %s28
      %s32 = sphi 0, %s29
      %s54 = sphi 0, %s56
      %s57 = sphi 0, %s54
      %s58 = sphi 0, %s57
      %s74 = sphi 0, %s58
      %s88 = sphi 0, %s90
      %s91 = sphi 0, %s88
      %s92 = sphi 0, %s91
      %s108 = sphi 0, %s92
      %s116 = sphi 0, %s118
      %s119 = sphi 0, %s116
      %s120 = sphi 0, %s119
      %s136 = sphi 0, %s120
    $region4: #{tpu_custom_call.1} parent=1 // loop_header_branch
      %20 = sbr.rel (%p18) target = $region8
    $region5: #{tpu_custom_call.1} parent=1 // loop_body
      %s22 = ssub.s32 %s17, 1
      %s23 = ssub.s32 %s17, 2
      %s33 = sadd.s32 1, %s26
      %p34 = scmp.ge.s32.totalorder %s33, 1
      %s35 = scalar_select %p34, 0, %s33
      %s36 = sadd.s32 1, %s25
      %s37 = scalar_select %p34, %s36, %s25
      %p38 = scmp.ge.s32.totalorder %s37, 1
      %s39 = scalar_select %p38, 0, %s37
      %s40 = sadd.s32 1, %s24
      %s41 = scalar_select %p38, %s40, %s24
      %p42 = scmp.ge.s32.totalorder %s41, 2
      %s43 = scalar_select %p42, 0, %s41
      %s44 = sadd.s32 %s25, %s26
      %p45 = scmp.lt.s32.totalorder %s44, 0
      %s46 = scalar_select %p45, %s44, 0
      %s47 = sadd.s32 %s39, %s35
      %p48 = scmp.lt.s32.totalorder %s47, 0
      %s49 = scalar_select %p48, %s47, 0
      %s50 = ssub.s32 %s24, %s43
      %s51 = ssub.s32 %s46, %s49
      %s52 = sor.u32 %s50, %s51
      %p53 = scmp.eq.s32.totalorder %s52, 0
      %s55 = sadd.s32 %s54, 1
      %s56 = scalar_select %p53, %s54, %s55
      %p59 = pneg %p53
      %p60 = scmp.eq.s32.totalorder %s17, 1
      %p61 = por %p59, %p60
      %p62 = scmp.ne.s32.totalorder %s54, %s57
      %p63 = scmp.eq.s32.totalorder %s17, 0
      %p64 = por %p62, %p63
      %p65 = scmp.ne.s32.totalorder %s54, %s57
      %p66 = scmp.eq.s32.totalorder %s22, 1
      %p67 = por %p65, %p66
      %p68 = scmp.ne.s32.totalorder %s57, %s58
      %p69 = scmp.eq.s32.totalorder %s22, 0
      %p70 = por %p68, %p69
      %p71 = scmp.ne.s32.totalorder %s57, %s58
      %p72 = scmp.eq.s32.totalorder %s23, 1
      %p73 = por %p71, %p72
      %p75 = scmp.ne.s32.totalorder %s58, %s74
      %p76 = scmp.eq.s32.totalorder %s23, 0
      %p77 = por %p75, %p76
      %s78 = sadd.s32 %s25, %s26
      %p79 = scmp.lt.s32.totalorder %s78, 0
      %s80 = scalar_select %p79, %s78, 0
      %s81 = sadd.s32 %s39, %s35
      %p82 = scmp.lt.s32.totalorder %s81, 0
      %s83 = scalar_select %p82, %s81, 0
      %s84 = ssub.s32 %s24, %s43
      %s85 = ssub.s32 %s80, %s83
      %s86 = sor.u32 %s84, %s85
      %p87 = scmp.eq.s32.totalorder %s86, 0
      %s89 = sadd.s32 %s88, 1
      %s90 = scalar_select %p87, %s88, %s89
      %p93 = pneg %p87
      %p94 = scmp.eq.s32.totalorder %s17, 1
      %p95 = por %p93, %p94
      %p96 = scmp.ne.s32.totalorder %s88, %s91
      %p97 = scmp.eq.s32.totalorder %s17, 0
      %p98 = por %p96, %p97
      %p99 = scmp.ne.s32.totalorder %s88, %s91
      %p100 = scmp.eq.s32.totalorder %s22, 1
      %p101 = por %p99, %p100
      %p102 = scmp.ne.s32.totalorder %s91, %s92
      %p103 = scmp.eq.s32.totalorder %s22, 0
      %p104 = por %p102, %p103
      %p105 = scmp.ne.s32.totalorder %s91, %s92
      %p106 = scmp.eq.s32.totalorder %s23, 1
      %p107 = por %p105, %p106
      %p109 = scmp.ne.s32.totalorder %s92, %s108
      %p110 = scmp.eq.s32.totalorder %s23, 0
      %p111 = por %p109, %p110
      %s112 = ssub.s32 %s24, %s43
      %s113 = ssub.s32 %s25, %s39
      %s114 = sor.u32 %s112, %s113
      %p115 = scmp.eq.s32.totalorder %s114, 0
      %s117 = sadd.s32 %s116, 1
      %s118 = scalar_select %p115, %s116, %s117
      %p121 = pneg %p115
      %p122 = scmp.eq.s32.totalorder %s17, 1
      %p123 = por %p121, %p122
      %p124 = scmp.ne.s32.totalorder %s116, %s119
      %p125 = scmp.eq.s32.totalorder %s17, 0
      %p126 = por %p124, %p125
      %p127 = scmp.ne.s32.totalorder %s116, %s119
      %p128 = scmp.eq.s32.totalorder %s22, 1
      %p129 = por %p127, %p128
      %p130 = scmp.ne.s32.totalorder %s119, %s120
      %p131 = scmp.eq.s32.totalorder %s22, 0
      %p132 = por %p130, %p131
      %p133 = scmp.ne.s32.totalorder %s119, %s120
      %p134 = scmp.eq.s32.totalorder %s23, 1
      %p135 = por %p133, %p134
      %p137 = scmp.ne.s32.totalorder %s120, %s136
      %p138 = scmp.eq.s32.totalorder %s23, 0
      %p139 = por %p137, %p138
      %p140 = scmp.le.s32.totalorder 1, %s17
      %p141 = scmp.lt.s32.totalorder %s17, 3
      %p142 = pnand %p140, %p141
      %p143 = pneg %p142
      // Predicated region
      $region9: #{tpu_custom_call.1} parent=5 // pred_check
        _
      $region10: #{tpu_custom_call.1} parent=5 // pred_check_branch
        %145 = sbr.rel (%p142) target = $region12
      $region11: #{tpu_custom_call.1} parent=5 // pred_region
        %s146 = ssub.s32 %s17, 1
      $region12: #{tpu_custom_call.1} parent=5 // pred_fallthru
        _
      %p147 = scmp.lt.s32.totalorder %s17, 2
      // Predicated region
      $region13: #{tpu_custom_call.1} parent=5 // pred_check
        %p148 = pneg %p147
      $region14: #{tpu_custom_call.1} parent=5 // pred_check_branch
        %150 = sbr.rel (%p148) target = $region16
      $region15: #{tpu_custom_call.1} parent=5 // pred_region
        // Predicated region
        $region17: #{tpu_custom_call.1} parent=15 // pred_check
          %p151 = pneg %p64
        $region18: #{tpu_custom_call.1} parent=15 // pred_check_branch
          %153 = sbr.rel (%p151) target = $region20
        $region19: #{tpu_custom_call.1} parent=15 // pred_region
          %s154 = sand.u32 %s54, 1
          %s155 = scalar_lea.sflag [#allocation3], %s154
          %s156 = sand.u32 %s54, 1
          %s157 = smul.addr %s156, 8
          %s158 = scalar_lea.vmem [#allocation2], %s157
          %s159 = sadd.s32 %s25, %s26
          %p160 = scmp.lt.s32.totalorder %s159, 0
          %s161 = scalar_select %p160, %s159, 0
          %163 = vsyncadd %s155, 0
          %s164 = smul.addr %s24, 4
          %s165 = sadd.s32 %s161, %s164
          %s166 = smul.addr %s165, 2
          %s167 = scalar_lea.hbm %s0, %s166
          %s168 = sshll.u32 %s167, 4
          %s169 = int_to_ptr.hbm [resolvable:$true] %s168
          %s170 = sshll.u32 %s158, 4
          %s171 = int_to_ptr.vmem [resolvable:$true] %s170
          %176 = dma.hbm_to_vmem [thread:$0]  %s169, 128, %s171, %s155, 32, 32, 2
        $region20: #{tpu_custom_call.1} parent=15 // pred_fallthru
          _
        // Predicated region
        $region21: #{tpu_custom_call.1} parent=15 // pred_check
          %p177 = pneg %p98
        $region22: #{tpu_custom_call.1} parent=15 // pred_check_branch
          %179 = sbr.rel (%p177) target = $region24
        $region23: #{tpu_custom_call.1} parent=15 // pred_region
          %s180 = sand.u32 %s88, 1
          %s181 = scalar_lea.sflag [#allocation6], %s180
          %s182 = sand.u32 %s88, 1
          %s183 = smul.addr %s182, 2
          %s184 = scalar_lea.vmem [#allocation5], %s183
          %s185 = sadd.s32 %s25, %s26
          %p186 = scmp.lt.s32.totalorder %s185, 0
          %s187 = scalar_select %p186, %s185, 0
          %189 = vsyncadd %s181, 0
          %s190 = sadd.s32 %s187, %s24
          %s191 = smul.addr %s190, 2
          %s192 = scalar_lea.hbm %s1, %s191
          %s194 = sshll.u32 %s192, 4
          %s195 = int_to_ptr.hbm [resolvable:$true] %s194
          %s196 = sshll.u32 %s184, 4
          %s197 = int_to_ptr.vmem [resolvable:$true] %s196
          %199 = dma.hbm_to_vmem [thread:$0]  %s195, 32, %s197, %s181
        $region24: #{tpu_custom_call.1} parent=15 // pred_fallthru
          _
      $region16: #{tpu_custom_call.1} parent=5 // pred_fallthru
        _
      %p200 = scmp.le.s32.totalorder 1, %s17
      %p201 = scmp.lt.s32.totalorder %s17, 3
      %p202 = pnand %p200, %p201
      %p203 = pneg %p202
      // Predicated region
      $region25: #{tpu_custom_call.1} parent=5 // pred_check
        _
      $region26: #{tpu_custom_call.1} parent=5 // pred_check_branch
        %205 = sbr.rel (%p202) target = $region28
      $region27: #{tpu_custom_call.1} parent=5 // pred_region
        %s206 = ssub.s32 %s17, 1
        %s207 = sand.u32 %s57, 1
        %s208 = scalar_lea.sflag [#allocation3], %s207
        %s209 = sand.u32 %s57, 1
        %s210 = smul.addr %s209, 8
        %s211 = scalar_lea.vmem [#allocation2], %s210
        // Predicated region
        $region29: #{tpu_custom_call.1} parent=27 // pred_check
          %p212 = pneg %p70
        $region30: #{tpu_custom_call.1} parent=27 // pred_check_branch
          %214 = sbr.rel (%p212) target = $region32
        $region31: #{tpu_custom_call.1} parent=27 // pred_region
          %216 = dma.done %s208, 128
        $region32: #{tpu_custom_call.1} parent=27 // pred_fallthru
          _
        %s217 = sand.u32 %s91, 1
        %s218 = scalar_lea.sflag [#allocation6], %s217
        %s219 = sand.u32 %s91, 1
        %s220 = smul.addr %s219, 2
        %s221 = scalar_lea.vmem [#allocation5], %s220
        // Predicated region
        $region33: #{tpu_custom_call.1} parent=27 // pred_check
          %p222 = pneg %p104
        $region34: #{tpu_custom_call.1} parent=27 // pred_check_branch
          %224 = sbr.rel (%p222) target = $region36
        $region35: #{tpu_custom_call.1} parent=27 // pred_region
          %226 = dma.done %s218, 32
        $region36: #{tpu_custom_call.1} parent=27 // pred_fallthru
          _
        %s227 = sand.u32 %s57, 1
        %s228 = scalar_lea.sflag [#allocation3], %s227
        %s229 = sand.u32 %s57, 1
        %s230 = smul.addr %s229, 8
        %s231 = scalar_lea.vmem [#allocation2], %s230
        %p232 = pneg %p70
        %p233 = pneg %p67
        %s234 = sand.u32 %s91, 1
        %s235 = scalar_lea.sflag [#allocation6], %s234
        %s236 = sand.u32 %s91, 1
        %s237 = smul.addr %s236, 2
        %s238 = scalar_lea.vmem [#allocation5], %s237
        %p239 = pneg %p104
        %p240 = pneg %p101
        %p241 = pneg %p132
        %p242 = pneg %p129
        %s243 = sand.u32 %s119, 1
        %s244 = scalar_lea.sflag [#allocation4], %s243
        %s245 = sand.u32 %s119, 1
        %s246 = smul.addr %s245, 56
        %s247 = scalar_lea.vmem [#allocation7], %s246
        %s248 = sadd.s32 %s28, %s29
        %p249 = scmp.lt.s32.totalorder %s248, 0
        %s250 = scalar_select %p249, %s248, 0
        %s251 = sadd.s32 %s28, %s29
        %p252 = scmp.lt.s32.totalorder %s251, 0
        %s253 = scalar_select %p252, %s251, 0
        %p254 = scmp.eq.s32.totalorder %s29, 0
        // Predicated region
        $region37: #{tpu_custom_call.1} parent=27 // pred_check
          %p255 = pneg %p254
        $region38: #{tpu_custom_call.1} parent=27 // pred_check_branch
          %257 = sbr.rel (%p255) target = $region40
        $region39: #{tpu_custom_call.1} parent=27 // pred_region
          %258 = vst [vmem:[%s247] sm:$0xff] 0.0
          %259 = vst [vmem:[%s247 + $0x8] sm:$0xff] 0.0
          %260 = vst [vmem:[%s247 + $0x10] sm:$0xff] 0.0
          %261 = vst [vmem:[%s247 + $0x18] sm:$0xff] 0.0
          %262 = vst [vmem:[%s247 + $0x20] sm:$0xff] 0.0
          %263 = vst [vmem:[%s247 + $0x28] sm:$0xff] 0.0
          %264 = vst [vmem:[%s247 + $0x30] sm:$0xff] 0.0
        $region40: #{tpu_custom_call.1} parent=27 // pred_fallthru
          _
        %v265 = vld [vmem:[%s211] sm:$0x3]
        %s266 = scalar_lea.vmem %s211, 2 [#allocation2]
        %v267 = vld [vmem:[%s266] sm:$0x3]
        %v268 = vmax.f32 %v265, %v267
        %s269 = scalar_lea.vmem %s211, 4 [#allocation2]
        %v270 = vld [vmem:[%s269] sm:$0x3]
        %v271 = vmax.f32 %v268, %v270
        %s272 = scalar_lea.vmem %s211, 6 [#allocation2]
        %v273 = vld [vmem:[%s272] sm:$0x3]
        %v274 = vmax.f32 %v271, %v273
        %v275 = vld [vmem:[%s221] sm:$0x3]
        %v276 = vmul.f32 %v274, %v275
        %v277 = vmul.f32 %v274, %v274
        %v278 = vmul.f32 %v275, %v275
        %vm279 = vcmp.gt.f32.partialorder %v275, 0.5
        %v280 = vsel %vm279, 1, 0
        %v281 = vcvt.s32.f32 %v280
        %vm282 = vcmp.lt.f32.partialorder %v275, 0.5
        %v283 = vsel %vm282, 1, 0
        %v284 = vcvt.s32.f32 %v283
        %v285 = vlog2.pop %v274
        %v286 = vmul.f32 %v285, 0.6931472
        %v287 = vmax.f32 %v286, -100.0
        %v288 = vsub.f32 1.0, %v274
        %v289 = vlog2.pop %v288
        %v290 = vmul.f32 %v289, 0.6931472
        %v291 = vmax.f32 %v290, -100.0
        %v292 = vmul.f32 %v275, %v287
        %v293 = vsub.f32 1.0, %v275
        %v294 = vmul.f32 %v293, %v291
        %v295 = vadd.f32 %v292, %v294
        %v296 = vsub.f32 0.0, %v295
        %v297 = vmul.f32 %v281, %v296
        %v298 = vmul.f32 %v284, %v296
        %vm299 = vcmask 1041408
        %v300 = vsel %vm299, %v276, 0.0
        %301 = vadd.xlane.f32.xlu0 %v300
        %v302 = vpop.xlane.xlu0 %301
        %v303 = vrot.slane %v302, 4
        %v304 = vadd.f32 %v302, %v303
        %v305 = vrot.slane %v304, 2
        %v306 = vadd.f32 %v304, %v305
        %v307 = vrot.slane %v306, 1
        %v308 = vadd.f32 %v306, %v307
        %s309 = vtos %v308
        %v310 = vlaneseq
        %v311 = vshrl.u32 %v310, 7
        %v312 = vld [vmem:[%s247] sm:$0xff]
        %vm313 = vcmp.eq.s32.totalorder %v311, 0
        %v314 = vstv %s309
        %v315 = vsel %vm313, %v314, 0.0
        %v316 = vadd.f32 %v312, %v315
        %317 = vst [vmem:[%s247] sm:$0xff] %v316
        %v318 = vsel %vm299, %v277, 0.0
        %319 = vadd.xlane.f32.xlu0 %v318
        %v320 = vpop.xlane.xlu0 %319
        %v321 = vrot.slane %v320, 4
        %v322 = vadd.f32 %v320, %v321
        %v323 = vrot.slane %v322, 2
        %v324 = vadd.f32 %v322, %v323
        %v325 = vrot.slane %v324, 1
        %v326 = vadd.f32 %v324, %v325
        %s327 = vtos %v326
        %s328 = scalar_lea.vmem %s247, 8 [#allocation7]
        %v329 = vld [vmem:[%s328] sm:$0xff]
        %v330 = vstv %s327
        %v331 = vsel %vm313, %v330, 0.0
        %v332 = vadd.f32 %v329, %v331
        %333 = vst [vmem:[%s328] sm:$0xff] %v332
        %v334 = vsel %vm299, %v278, 0.0
        %335 = vadd.xlane.f32.xlu0 %v334
        %v336 = vpop.xlane.xlu0 %335
        %v337 = vrot.slane %v336, 4
        %v338 = vadd.f32 %v336, %v337
        %v339 = vrot.slane %v338, 2
        %v340 = vadd.f32 %v338, %v339
        %v341 = vrot.slane %v340, 1
        %v342 = vadd.f32 %v340, %v341
        %s343 = vtos %v342
        %s344 = scalar_lea.vmem %s247, 16 [#allocation7]
        %v345 = vld [vmem:[%s344] sm:$0xff]
        %v346 = vstv %s343
        %v347 = vsel %vm313, %v346, 0.0
        %v348 = vadd.f32 %v345, %v347
        %349 = vst [vmem:[%s344] sm:$0xff] %v348
        %v350 = vsel %vm299, %v297, 0.0
        %351 = vadd.xlane.f32.xlu0 %v350
        %v352 = vpop.xlane.xlu0 %351
        %v353 = vrot.slane %v352, 4
        %v354 = vadd.f32 %v352, %v353
        %v355 = vrot.slane %v354, 2
        %v356 = vadd.f32 %v354, %v355
        %v357 = vrot.slane %v356, 1
        %v358 = vadd.f32 %v356, %v357
        %s359 = vtos %v358
        %s360 = scalar_lea.vmem %s247, 24 [#allocation7]
        %v361 = vld [vmem:[%s360] sm:$0xff]
        %v362 = vstv %s359
        %v363 = vsel %vm313, %v362, 0.0
        %v364 = vadd.f32 %v361, %v363
        %365 = vst [vmem:[%s360] sm:$0xff] %v364
        %v366 = vsel %vm299, %v298, 0.0
        %367 = vadd.xlane.f32.xlu0 %v366
        %v368 = vpop.xlane.xlu0 %367
        %v369 = vrot.slane %v368, 4
        %v370 = vadd.f32 %v368, %v369
        %v371 = vrot.slane %v370, 2
        %v372 = vadd.f32 %v370, %v371
        %v373 = vrot.slane %v372, 1
        %v374 = vadd.f32 %v372, %v373
        %s375 = vtos %v374
        %s376 = scalar_lea.vmem %s247, 32 [#allocation7]
        %v377 = vld [vmem:[%s376] sm:$0xff]
        %v378 = vstv %s375
        %v379 = vsel %vm313, %v378, 0.0
        %v380 = vadd.f32 %v377, %v379
        %381 = vst [vmem:[%s376] sm:$0xff] %v380
        %v382 = vsel %vm299, %v281, 0.0
        %383 = vadd.xlane.f32.xlu0 %v382
        %v384 = vpop.xlane.xlu0 %383
        %v385 = vrot.slane %v384, 4
        %v386 = vadd.f32 %v384, %v385
        %v387 = vrot.slane %v386, 2
        %v388 = vadd.f32 %v386, %v387
        %v389 = vrot.slane %v388, 1
        %v390 = vadd.f32 %v388, %v389
        %s391 = vtos %v390
        %s392 = scalar_lea.vmem %s247, 40 [#allocation7]
        %v393 = vld [vmem:[%s392] sm:$0xff]
        %v394 = vstv %s391
        %v395 = vsel %vm313, %v394, 0.0
        %v396 = vadd.f32 %v393, %v395
        %397 = vst [vmem:[%s392] sm:$0xff] %v396
        %v398 = vsel %vm299, %v284, 0.0
        %399 = vadd.xlane.f32.xlu0 %v398
        %v400 = vpop.xlane.xlu0 %399
        %v401 = vrot.slane %v400, 4
        %v402 = vadd.f32 %v400, %v401
        %v403 = vrot.slane %v402, 2
        %v404 = vadd.f32 %v402, %v403
        %v405 = vrot.slane %v404, 1
        %v406 = vadd.f32 %v404, %v405
        %s407 = vtos %v406
        %s408 = scalar_lea.vmem %s247, 48 [#allocation7]
        %v409 = vld [vmem:[%s408] sm:$0xff]
        %v410 = vstv %s407
        %v411 = vsel %vm313, %v410, 0.0
        %v412 = vadd.f32 %v409, %v411
        %413 = vst [vmem:[%s408] sm:$0xff] %v412
        %s414 = sand.u32 %s119, 1
        %s415 = scalar_lea.sflag [#allocation4], %s414
        %s416 = sand.u32 %s119, 1
        %s417 = smul.addr %s416, 56
        %s418 = scalar_lea.vmem [#allocation7], %s417
        // Predicated region
        $region41: #{tpu_custom_call.1} parent=27 // pred_check
          %p419 = pneg %p129
        $region42: #{tpu_custom_call.1} parent=27 // pred_check_branch
          %421 = sbr.rel (%p419) target = $region44
        $region43: #{tpu_custom_call.1} parent=27 // pred_region
          %423 = vsyncadd %s415, 0
          %s424 = smul.addr %s28, 7
          %s425 = smul.addr %s27, 7
          %s426 = sadd.s32 %s424, %s425
          %s427 = smul.addr %s426, 8
          %s428 = scalar_lea.hbm %s2, %s427
          %s429 = sshll.u32 %s418, 4
          %s430 = int_to_ptr.vmem [resolvable:$true] %s429
          %s431 = sshll.u32 %s428, 4
          %s432 = int_to_ptr.hbm [resolvable:$true] %s431
          %437 = dma.vmem_to_hbm [thread:$0]  %s430, 896, %s432, %s415, 128, 128, 8
        $region44: #{tpu_custom_call.1} parent=27 // pred_fallthru
          _
      $region28: #{tpu_custom_call.1} parent=5 // pred_fallthru
        _
      %p438 = scmp.le.s32.totalorder 2, %s17
      // Predicated region
      $region45: #{tpu_custom_call.1} parent=5 // pred_check
        %p439 = pneg %p438
      $region46: #{tpu_custom_call.1} parent=5 // pred_check_branch
        %441 = sbr.rel (%p439) target = $region48
      $region47: #{tpu_custom_call.1} parent=5 // pred_region
        %s442 = ssub.s32 %s17, 2
        // Predicated region
        $region49: #{tpu_custom_call.1} parent=47 // pred_check
          %p443 = pneg %p135
        $region50: #{tpu_custom_call.1} parent=47 // pred_check_branch
          %445 = sbr.rel (%p443) target = $region52
        $region51: #{tpu_custom_call.1} parent=47 // pred_region
          %s446 = sand.u32 %s120, 1
          %s447 = scalar_lea.sflag [#allocation4], %s446
          %s448 = sand.u32 %s120, 1
          %s449 = smul.addr %s448, 56
          %s450 = scalar_lea.vmem [#allocation7], %s449
          %452 = dma.done %s447, 896
        $region52: #{tpu_custom_call.1} parent=47 // pred_fallthru
          _
      $region48: #{tpu_custom_call.1} parent=5 // pred_fallthru
        _
    $region6: #{tpu_custom_call.1} parent=1 // loop_footer
      %s21 = sadd.s32 1, %s17
    $region7: #{tpu_custom_call.1} parent=1 // loop_footer_branch
      %16 = sbr.rel target = $region3
    $region8: #{tpu_custom_call.1} parent=1 // loop_exit
      _
    %453 = vsyncpa [#allocation3], 1
    %s454 = scalar_lea.sflag [#allocation3], 1
    %455 = vsyncpa %s454, 1
    %456 = vsyncpa [#allocation6], 1
    %s457 = scalar_lea.sflag [#allocation6], 1
    %458 = vsyncpa %s457, 1
    %459 = vsyncpa [#allocation4], 1
    %s460 = scalar_lea.sflag [#allocation4], 1
    %461 = vsyncpa %s460, 1

</llo_original>
